<compile_context>
chip_gen: v7x
topology: tpu7x:2x2x1
jax: 0.10.0
libtpu: 0.0.40
codegen_flags: <defaults>
</compile_context>

<pallas_src>
import jax
import jax.numpy as jnp
from jax.experimental import pallas as pl
from jax.experimental.pallas import tpu as pltpu


_CHUNK = 128  # lane width of the VMEM accumulators / per-chunk fold


def _make_cca_kernel(b_tile, C, hw_tile, n_h, last_valid, HW):
    """Builds the kernel with all tiling constants closed over as Python ints/floats
    (no jnp scalars -> nothing is captured as a traced constant)."""
    inv_hw = 1.0 / float(HW)       # python float literal
    neg_inf = float("-inf")        # python float literal

    def _accumulate(x_ref, sum_acc, max_acc, valid):
        """Fold `valid` (static int) lanes of x_ref into the (b_tile, C, _CHUNK)
        accumulators.  Chunk pairs are combined in vregs before each scratch RMW."""
        n_full = valid // _CHUNK
        rem = valid % _CHUNK

        j = 0
        while j + 1 < n_full:                      # pairs of full chunks: 1 RMW / 2 chunks
            x0 = x_ref[:, :, j * _CHUNK:(j + 1) * _CHUNK].astype(jnp.float32)
            x1 = x_ref[:, :, (j + 1) * _CHUNK:(j + 2) * _CHUNK].astype(jnp.float32)
            sum_acc[...] = sum_acc[...] + (x0 + x1)
            max_acc[...] = jnp.maximum(max_acc[...], jnp.maximum(x0, x1))
            j += 2
        if j < n_full:                             # leftover full chunk
            x0 = x_ref[:, :, j * _CHUNK:(j + 1) * _CHUNK].astype(jnp.float32)
            sum_acc[...] = sum_acc[...] + x0
            max_acc[...] = jnp.maximum(max_acc[...], x0)
        if rem > 0:                                # exact-size static remainder slice
            lo = n_full * _CHUNK
            xr = x_ref[:, :, lo:lo + rem].astype(jnp.float32)
            sum_acc[:, :, :rem] = sum_acc[:, :, :rem] + xr
            max_acc[:, :, :rem] = jnp.maximum(max_acc[:, :, :rem], xr)

    def kernel(x_ref, w1t_ref, w2t_ref, o_ref, sum_acc, max_acc):
        # x_ref  : (b_tile, C, hw_tile)  native dtype
        # w1t_ref: (C, Ch)  f32   (transpose of conv1 weight)
        # w2t_ref: (Ch, C)  f32   (transpose of conv2 weight)
        # o_ref  : (b_tile, C, 1) f32
        # sum_acc / max_acc : (b_tile, C, _CHUNK) f32 VMEM scratch
        h = pl.program_id(1)
        last = n_h - 1

        @pl.when(h == 0)
        def _init():
            sum_acc[...] = jnp.zeros(sum_acc.shape, dtype=jnp.float32)
            max_acc[...] = jnp.full(max_acc.shape, neg_inf, dtype=jnp.float32)

        if n_h == 1:
            _accumulate(x_ref, sum_acc, max_acc, last_valid)          # == HW
        elif last_valid != hw_tile:
            @pl.when(h < last)                                        # mask-free fast path
            def _steady():
                _accumulate(x_ref, sum_acc, max_acc, hw_tile)

            @pl.when(h == last)                                       # static-size tail
            def _tail():
                _accumulate(x_ref, sum_acc, max_acc, last_valid)
        else:
            _accumulate(x_ref, sum_acc, max_acc, hw_tile)

        # Epilogue: single cross-lane reduce + bottleneck FC + sigmoid.
        @pl.when(h == last)
        def _epilogue():
            avg = jnp.sum(sum_acc[...], axis=-1) * inv_hw             # (b_tile, C)
            mx = jnp.max(max_acc[...], axis=-1)                       # (b_tile, C)

            # One MXU weight push for the first FC: stack avg and max.
            pooled = jnp.concatenate([avg, mx], axis=0)               # (2*b_tile, C)
            hid = jnp.maximum(
                jnp.dot(pooled, w1t_ref[...], preferred_element_type=jnp.float32),
                0.0)                                                  # (2*b_tile, Ch)
            # relu(a)@W2 + relu(b)@W2 == (relu(a)+relu(b))@W2 -> one second matmul.
            hsum = hid[:b_tile] + hid[b_tile:]
            out = jnp.dot(hsum, w2t_ref[...], preferred_element_type=jnp.float32)
            o_ref[...] = jax.nn.sigmoid(out)[:, :, None]

    return kernel


def _num_tensorcores():
    # v7x-class parts have 2 TensorCores per chip; v5e/v6e have 1.
    try:
        kind = str(getattr(jax.devices()[0], "device_kind", "")).lower()
        if "v7" in kind:
            return 2
    except Exception:
        pass
    return 1


def _vmem_capacity_bytes():
    try:
        return int(pltpu.get_tpu_info().vmem_capacity_bytes)
    except Exception:
        return 64 << 20   # conservative fallback: valid on every generation


def _choose_b_tile(B, n_tc):
    if n_tc >= 2 and B >= 2:
        # Guarantee >= 2 parallel grid steps so both TensorCores are used.
        for d in range(min(B // 2, 8), 0, -1):
            if B % d == 0:
                return d
        return 1
    if B <= 8:
        return B
    for d in range(8, 0, -1):
        if B % d == 0:
            return d
    return 1


def channel_concat_attention(x_nchw, w1, w2, *, max_tile_bytes=None):
    """x_nchw: (B, C, H, W); w1: (Ch, C) conv1 1x1 weight; w2: (C, Ch) conv2 1x1 weight.
    Returns sigmoid(fc(avg_pool(x)) + fc(max_pool(x))) with shape (B, C, 1, 1)."""
    B, C, H, W = x_nchw.shape
    Ch = w1.shape[0]
    assert w1.shape == (Ch, C) and w2.shape == (C, Ch)
    HW = H * W

    # Keep the input in its native dtype through the HBM->VMEM DMA (mem-bound kernel).
    x_flat = x_nchw.reshape(B, C, HW)
    w1t = jnp.transpose(w1).astype(jnp.float32)   # (C, Ch)
    w2t = jnp.transpose(w2).astype(jnp.float32)   # (Ch, C)
    itemsize = x_flat.dtype.itemsize

    # --- generation-aware budgets -------------------------------------------
    n_tc = _num_tensorcores()
    vmem_cap = _vmem_capacity_bytes()
    vmem_budget = int(vmem_cap * 0.80)   # ~51 MiB on 64 MiB parts, ~102 MiB on 128 MiB parts

    # --- batch tiling (parallel grid axis) -----------------------------------
    b_tile = _choose_b_tile(B, n_tc)
    n_b = B // b_tile

    # --- spatial tiling driven by the VMEM byte budget ------------------------
    fixed_bytes = (2 * (w1t.size + w2t.size) * 4      # weights (double-buffered)
                   + 2 * b_tile * C * _CHUNK * 4      # f32 accumulators
                   + 2 * b_tile * C * 4               # output
                   + (4 << 20))                       # compiler slack
    tile_budget = max(512 << 10, (vmem_budget - fixed_bytes) // 2)   # per input buffer
    if max_tile_bytes is not None:
        tile_budget = min(tile_budget, int(max_tile_bytes))

    full_bytes = b_tile * C * HW * itemsize
    if full_bytes <= tile_budget:
        hw_tile = HW                                   # full-extent last dim: no grid padding
    else:
        hw_tile = (tile_budget // (b_tile * C * itemsize)) // _CHUNK * _CHUNK
        hw_tile = int(max(_CHUNK, min(hw_tile, (HW // _CHUNK) * _CHUNK)))
    n_h = pl.cdiv(HW, hw_tile)
    last_valid = HW - (n_h - 1) * hw_tile              # static valid lanes on the last step

    # --- VMEM limit (double-buffered input tile + scratch + weights) ----------
    x_tile_bytes = b_tile * C * hw_tile * itemsize
    est_vmem = 2 * x_tile_bytes + fixed_bytes
    vmem_limit = int(min(max(est_vmem, 16 << 20), vmem_budget))

    # --- advisory cost estimate (mem-bound) ------------------------------------
    cost = pl.CostEstimate(
        flops=int(2 * B * C * HW + 4 * B * C * Ch),
        transcendentals=int(B * C),
        bytes_accessed=int(x_flat.size * itemsize + (w1t.size + w2t.size + B * C) * 4),
    )

    kernel = _make_cca_kernel(b_tile, C, hw_tile, n_h, last_valid, HW)

    out = pl.pallas_call(
        kernel,
        out_shape=jax.ShapeDtypeStruct((B, C, 1), jnp.float32),
        grid_spec=pltpu.PrefetchScalarGridSpec(
            num_scalar_prefetch=0,
            grid=(n_b, n_h),
            in_specs=[
                pl.BlockSpec((b_tile, C, hw_tile), lambda b, h: (b, 0, h)),
                pl.BlockSpec((C, Ch), lambda b, h: (0, 0)),   # weights stay VMEM-resident
                pl.BlockSpec((Ch, C), lambda b, h: (0, 0)),
            ],
            out_specs=pl.BlockSpec((b_tile, C, 1), lambda b, h: (b, 0, 0)),
            scratch_shapes=[
                pltpu.VMEM((b_tile, C, _CHUNK), jnp.float32),   # running sum
                pltpu.VMEM((b_tile, C, _CHUNK), jnp.float32),   # running max
            ],
        ),
        compiler_params=pltpu.CompilerParams(
            dimension_semantics=("parallel", "arbitrary"),
            vmem_limit_bytes=vmem_limit,
        ),
        cost_estimate=cost,
    )(x_flat, w1t, w2t)

    return out.astype(x_nchw.dtype).reshape(B, C, 1, 1)


def _reference(x, w1, w2):
    # Pure-JAX reference replicating the PyTorch forward.
    B, C, H, W = x.shape
    xf = x.astype(jnp.float32)
    avg = jnp.mean(xf, axis=(2, 3))                     # (B, C)
    mx = jnp.max(xf, axis=(2, 3))                       # (B, C)

    def fc(p):
        h = jnp.maximum(p @ w1.T.astype(jnp.float32), 0.0)   # (B, Ch)
        return h @ w2.T.astype(jnp.float32)                   # (B, C)

    return jax.nn.sigmoid(fc(avg) + fc(mx)).reshape(B, C, 1, 1)


if __name__ == "__main__":
    # in_channels must be >= 16 so that in_channels // 16 >= 1.
    # HW = 24*24 = 576 exercises the multi-chunk + 64-lane remainder path.
    B, C, H, W = 2, 64, 24, 24
    Ch = C // 16

    key = jax.random.PRNGKey(0)
    kx, k1, k2 = jax.random.split(key, 3)
    x = jax.random.normal(kx, (B, C, H, W), dtype=jnp.float32)
    # Deterministic synthetic conv weights (1x1 convs -> plain matrices).
    w1 = jax.random.normal(k1, (Ch, C), dtype=jnp.float32) * (1.0 / jnp.sqrt(C))
    w2 = jax.random.normal(k2, (C, Ch), dtype=jnp.float32) * (1.0 / jnp.sqrt(Ch))

    ref = jax.block_until_ready(_reference(x, w1, w2))

    # 1) Default path: full-HW block, single reduction step.
    out = jax.block_until_ready(channel_concat_attention(x, w1, w2))
    assert out.shape == (B, C, 1, 1)
    assert jnp.allclose(out, ref, atol=1e-4, rtol=1e-4), "mismatch vs reference (full-HW path)"

    # 2) Forced small tile budget: multi-step reduction grid with a partial last tile.
    out_tiled = jax.block_until_ready(
        channel_concat_attention(x, w1, w2, max_tile_bytes=64 << 10))
    assert jnp.allclose(out_tiled, ref, atol=1e-4, rtol=1e-4), "mismatch vs reference (tiled path)"

    print("KERNEL_OK")
</pallas_src>

<mosaic_0001>
module attributes {stable_mosaic.version = 11 : i64} {
  func.func @kernel(%arg0: i32, %arg1: i32, %arg2: memref<2x64x576xf32, #tpu.memory_space<vmem>>, %arg3: memref<64x4xf32, #tpu.memory_space<vmem>>, %arg4: memref<4x64xf32, #tpu.memory_space<vmem>>, %arg5: memref<2x64x1xf32, #tpu.memory_space<vmem>>, %arg6: memref<2x64x128xf32, #tpu.memory_space<vmem>>, %arg7: memref<2x64x128xf32, #tpu.memory_space<vmem>>) attributes {dimension_semantics = [#tpu.dimension_semantics<parallel>, #tpu.dimension_semantics<arbitrary>], iteration_bounds = array<i64: 1, 1>, scalar_prefetch = 0 : i64, scratch_operands = 2 : i64, tpu.core_type = #tpu.core_type<tc>, window_params = [{transform_indices = @transform_0, window_bounds = array<i64: 2, 64, 576>}, {pipeline_mode = #tpu.pipeline_mode<synchronous>, transform_indices = @transform_1, window_bounds = array<i64: 64, 4>}, {pipeline_mode = #tpu.pipeline_mode<synchronous>, transform_indices = @transform_2, window_bounds = array<i64: 4, 64>}, {transform_indices = @transform_3, window_bounds = array<i64: 2, 64, 1>}]} {
    %c0_i32 = arith.constant 0 : i32
    %0 = arith.cmpi eq, %arg1, %c0_i32 : i32
    %1 = arith.extui %0 : i1 to i32
    %c0_i32_0 = arith.constant 0 : i32
    %2 = arith.cmpi ne, %1, %c0_i32_0 : i32
    scf.if %2 {
      %cst = arith.constant 0.000000e+00 : f32
      %33 = vector.broadcast %cst : f32 to vector<2x64x128xf32>
      %c0_49 = arith.constant 0 : index
      %c0_50 = arith.constant 0 : index
      %c0_51 = arith.constant 0 : index
      %34 = vector.load %arg6[%c0_49, %c0_50, %c0_51] : memref<2x64x128xf32, #tpu.memory_space<vmem>>, vector<2x64x128xf32>
      tpu.vector_store %arg6[%c0_49, %c0_50, %c0_51], %33 {strides = array<i32>} : memref<2x64x128xf32, #tpu.memory_space<vmem>>, vector<2x64x128xf32>,
      %cst_52 = arith.constant 0xFF800000 : f32
      %35 = vector.broadcast %cst_52 : f32 to vector<2x64x128xf32>
      %c0_53 = arith.constant 0 : index
      %c0_54 = arith.constant 0 : index
      %c0_55 = arith.constant 0 : index
      %36 = vector.load %arg7[%c0_53, %c0_54, %c0_55] : memref<2x64x128xf32, #tpu.memory_space<vmem>>, vector<2x64x128xf32>
      tpu.vector_store %arg7[%c0_53, %c0_54, %c0_55], %35 {strides = array<i32>} : memref<2x64x128xf32, #tpu.memory_space<vmem>>, vector<2x64x128xf32>,
    } else {
    }
    %c0 = arith.constant 0 : index
    %c0_1 = arith.constant 0 : index
    %c0_2 = arith.constant 0 : index
    %3 = vector.load %arg2[%c0, %c0_1, %c0_2] : memref<2x64x576xf32, #tpu.memory_space<vmem>>, vector<2x64x128xf32>
    %c0_3 = arith.constant 0 : index
    %c0_4 = arith.constant 0 : index
    %c128 = arith.constant 128 : index
    %4 = vector.load %arg2[%c0_3, %c0_4, %c128] : memref<2x64x576xf32, #tpu.memory_space<vmem>>, vector<2x64x128xf32>
    %c0_5 = arith.constant 0 : index
    %c0_6 = arith.constant 0 : index
    %c0_7 = arith.constant 0 : index
    %5 = vector.load %arg6[%c0_5, %c0_6, %c0_7] : memref<2x64x128xf32, #tpu.memory_space<vmem>>, vector<2x64x128xf32>
    %6 = arith.addf %3, %4 : vector<2x64x128xf32>
    %7 = arith.addf %5, %6 : vector<2x64x128xf32>
    %c0_8 = arith.constant 0 : index
    %c0_9 = arith.constant 0 : index
    %c0_10 = arith.constant 0 : index
    %8 = vector.load %arg6[%c0_8, %c0_9, %c0_10] : memref<2x64x128xf32, #tpu.memory_space<vmem>>, vector<2x64x128xf32>
    tpu.vector_store %arg6[%c0_8, %c0_9, %c0_10], %7 {strides = array<i32>} : memref<2x64x128xf32, #tpu.memory_space<vmem>>, vector<2x64x128xf32>,
    %c0_11 = arith.constant 0 : index
    %c0_12 = arith.constant 0 : index
    %c0_13 = arith.constant 0 : index
    %9 = vector.load %arg7[%c0_11, %c0_12, %c0_13] : memref<2x64x128xf32, #tpu.memory_space<vmem>>, vector<2x64x128xf32>
    %10 = arith.maximumf %3, %4 : vector<2x64x128xf32>
    %11 = arith.maximumf %9, %10 : vector<2x64x128xf32>
    %c0_14 = arith.constant 0 : index
    %c0_15 = arith.constant 0 : index
    %c0_16 = arith.constant 0 : index
    %12 = vector.load %arg7[%c0_14, %c0_15, %c0_16] : memref<2x64x128xf32, #tpu.memory_space<vmem>>, vector<2x64x128xf32>
    tpu.vector_store %arg7[%c0_14, %c0_15, %c0_16], %11 {strides = array<i32>} : memref<2x64x128xf32, #tpu.memory_space<vmem>>, vector<2x64x128xf32>,
    %c0_17 = arith.constant 0 : index
    %c0_18 = arith.constant 0 : index
    %c256 = arith.constant 256 : index
    %13 = vector.load %arg2[%c0_17, %c0_18, %c256] : memref<2x64x576xf32, #tpu.memory_space<vmem>>, vector<2x64x128xf32>
    %c0_19 = arith.constant 0 : index
    %c0_20 = arith.constant 0 : index
    %c384 = arith.constant 384 : index
    %14 = vector.load %arg2[%c0_19, %c0_20, %c384] : memref<2x64x576xf32, #tpu.memory_space<vmem>>, vector<2x64x128xf32>
    %c0_21 = arith.constant 0 : index
    %c0_22 = arith.constant 0 : index
    %c0_23 = arith.constant 0 : index
    %15 = vector.load %arg6[%c0_21, %c0_22, %c0_23] : memref<2x64x128xf32, #tpu.memory_space<vmem>>, vector<2x64x128xf32>
    %16 = arith.addf %13, %14 : vector<2x64x128xf32>
    %17 = arith.addf %15, %16 : vector<2x64x128xf32>
    %c0_24 = arith.constant 0 : index
    %c0_25 = arith.constant 0 : index
    %c0_26 = arith.constant 0 : index
    %18 = vector.load %arg6[%c0_24, %c0_25, %c0_26] : memref<2x64x128xf32, #tpu.memory_space<vmem>>, vector<2x64x128xf32>
    tpu.vector_store %arg6[%c0_24, %c0_25, %c0_26], %17 {strides = array<i32>} : memref<2x64x128xf32, #tpu.memory_space<vmem>>, vector<2x64x128xf32>,
    %c0_27 = arith.constant 0 : index
    %c0_28 = arith.constant 0 : index
    %c0_29 = arith.constant 0 : index
    %19 = vector.load %arg7[%c0_27, %c0_28, %c0_29] : memref<2x64x128xf32, #tpu.memory_space<vmem>>, vector<2x64x128xf32>
    %20 = arith.maximumf %13, %14 : vector<2x64x128xf32>
    %21 = arith.maximumf %19, %20 : vector<2x64x128xf32>
    %c0_30 = arith.constant 0 : index
    %c0_31 = arith.constant 0 : index
    %c0_32 = arith.constant 0 : index
    %22 = vector.load %arg7[%c0_30, %c0_31, %c0_32] : memref<2x64x128xf32, #tpu.memory_space<vmem>>, vector<2x64x128xf32>
    tpu.vector_store %arg7[%c0_30, %c0_31, %c0_32], %21 {strides = array<i32>} : memref<2x64x128xf32, #tpu.memory_space<vmem>>, vector<2x64x128xf32>,
    %c0_33 = arith.constant 0 : index
    %c0_34 = arith.constant 0 : index
    %c512 = arith.constant 512 : index
    %23 = vector.load %arg2[%c0_33, %c0_34, %c512] : memref<2x64x576xf32, #tpu.memory_space<vmem>>, vector<2x64x64xf32>
    %c0_35 = arith.constant 0 : index
    %c0_36 = arith.constant 0 : index
    %c0_37 = arith.constant 0 : index
    %24 = vector.load %arg6[%c0_35, %c0_36, %c0_37] : memref<2x64x128xf32, #tpu.memory_space<vmem>>, vector<2x64x64xf32>
    %25 = arith.addf %24, %23 : vector<2x64x64xf32>
    %c0_38 = arith.constant 0 : index
    %c0_39 = arith.constant 0 : index
    %c0_40 = arith.constant 0 : index
    %26 = vector.load %arg6[%c0_38, %c0_39, %c0_40] : memref<2x64x128xf32, #tpu.memory_space<vmem>>, vector<2x64x64xf32>
    tpu.vector_store %arg6[%c0_38, %c0_39, %c0_40], %25 {strides = array<i32>} : memref<2x64x128xf32, #tpu.memory_space<vmem>>, vector<2x64x64xf32>,
    %c0_41 = arith.constant 0 : index
    %c0_42 = arith.constant 0 : index
    %c0_43 = arith.constant 0 : index
    %27 = vector.load %arg7[%c0_41, %c0_42, %c0_43] : memref<2x64x128xf32, #tpu.memory_space<vmem>>, vector<2x64x64xf32>
    %28 = arith.maximumf %27, %23 : vector<2x64x64xf32>
    %c0_44 = arith.constant 0 : index
    %c0_45 = arith.constant 0 : index
    %c0_46 = arith.constant 0 : index
    %29 = vector.load %arg7[%c0_44, %c0_45, %c0_46] : memref<2x64x128xf32, #tpu.memory_space<vmem>>, vector<2x64x64xf32>
    tpu.vector_store %arg7[%c0_44, %c0_45, %c0_46], %28 {strides = array<i32>} : memref<2x64x128xf32, #tpu.memory_space<vmem>>, vector<2x64x64xf32>,
    %c0_i32_47 = arith.constant 0 : i32
    %30 = arith.cmpi eq, %arg1, %c0_i32_47 : i32
    %31 = arith.extui %30 : i1 to i32
    %c0_i32_48 = arith.constant 0 : i32
    %32 = arith.cmpi ne, %31, %c0_i32_48 : i32
    scf.if %32 {
      %c0_49 = arith.constant 0 : index
      %c0_50 = arith.constant 0 : index
      %c0_51 = arith.constant 0 : index
      %33 = vector.load %arg6[%c0_49, %c0_50, %c0_51] : memref<2x64x128xf32, #tpu.memory_space<vmem>>, vector<2x64x128xf32>
      %cst = arith.constant dense<0.000000e+00> : vector<2x64xf32>
      %34 = vector.multi_reduction <add>, %33, %cst [2] : vector<2x64x128xf32> to vector<2x64xf32>
      %cst_52 = arith.constant 0.00173611112 : f32
      %35 = vector.broadcast %cst_52 : f32 to vector<2x64xf32>
      %36 = arith.mulf %34, %35 : vector<2x64xf32>
      %c0_53 = arith.constant 0 : index
      %c0_54 = arith.constant 0 : index
      %c0_55 = arith.constant 0 : index
      %37 = vector.load %arg7[%c0_53, %c0_54, %c0_55] : memref<2x64x128xf32, #tpu.memory_space<vmem>>, vector<2x64x128xf32>
      %cst_56 = arith.constant dense<0xFF800000> : vector<2x64xf32>
      %38 = vector.multi_reduction <maximumf>, %37, %cst_56 [2] : vector<2x64x128xf32> to vector<2x64xf32>
      %39 = tpu.concatenate %36, %38 in 0 : vector<2x64xf32>, vector<2x64xf32> -> vector<4x64xf32>
      %c0_57 = arith.constant 0 : index
      %c0_58 = arith.constant 0 : index
      %40 = vector.load %arg3[%c0_57, %c0_58] : memref<64x4xf32, #tpu.memory_space<vmem>>, vector<64x4xf32>
      %cst_59 = arith.constant dense<0.000000e+00> : vector<4x4xf32>
      %41 = tpu.matmul %39, %40, %cst_59 {dimension_numbers = #tpu.dot_dimension_numbers<[1], [0], [0], [1], [0, 0, 1, 1], [], []>} : vector<4x64xf32>, vector<64x4xf32>, vector<4x4xf32> -> vector<4x4xf32>
      %cst_60 = arith.constant 0.000000e+00 : f32
      %42 = vector.broadcast %cst_60 : f32 to vector<4x4xf32>
      %43 = arith.maximumf %41, %42 : vector<4x4xf32>
      %44 = vector.extract_strided_slice %43 {offsets = [0, 0], sizes = [2, 4], strides = [1, 1]} : vector<4x4xf32> to vector<2x4xf32>
      %45 = vector.extract_strided_slice %43 {offsets = [2, 0], sizes = [2, 4], strides = [1, 1]} : vector<4x4xf32> to vector<2x4xf32>
      %46 = arith.addf %44, %45 : vector<2x4xf32>
      %c0_61 = arith.constant 0 : index
      %c0_62 = arith.constant 0 : index
      %47 = vector.load %arg4[%c0_61, %c0_62] : memref<4x64xf32, #tpu.memory_space<vmem>>, vector<4x64xf32>
      %cst_63 = arith.constant dense<0.000000e+00> : vector<2x64xf32>
      %48 = tpu.matmul %46, %47, %cst_63 {dimension_numbers = #tpu.dot_dimension_numbers<[1], [0], [0], [1], [0, 0, 1, 1], [], []>} : vector<2x4xf32>, vector<4x64xf32>, vector<2x64xf32> -> vector<2x64xf32>
      %49 = arith.negf %48 : vector<2x64xf32>
      %50 = math.exp %49 : vector<2x64xf32>
      %cst_64 = arith.constant 1.000000e+00 : f32
      %51 = vector.broadcast %cst_64 : f32 to vector<2x64xf32>
      %52 = arith.addf %51, %50 : vector<2x64xf32>
      %53 = arith.divf %51, %52 : vector<2x64xf32>
      %54 = vector.shape_cast %53 : vector<2x64xf32> to vector<2x64x1xf32>
      %c0_65 = arith.constant 0 : index
      %c0_66 = arith.constant 0 : index
      %c0_67 = arith.constant 0 : index
      %55 = vector.load %arg5[%c0_65, %c0_66, %c0_67] : memref<2x64x1xf32, #tpu.memory_space<vmem>>, vector<2x64x1xf32>
      tpu.vector_store %arg5[%c0_65, %c0_66, %c0_67], %54 {strides = array<i32>} : memref<2x64x1xf32, #tpu.memory_space<vmem>>, vector<2x64x1xf32>,
    } else {
    }
    return
  }
  func.func @transform_0(%arg0: i32, %arg1: i32) -> (i32, i32, i32) {
    %c0_i32 = arith.constant 0 : i32
    %c0_i32_0 = arith.constant 0 : i32
    return %arg0, %c0_i32, %arg1 : i32, i32, i32
  }
  func.func @transform_1(%arg0: i32, %arg1: i32) -> (i32, i32) {
    %c0_i32 = arith.constant 0 : i32
    %c0_i32_0 = arith.constant 0 : i32
    %c0_i32_1 = arith.constant 0 : i32
    return %c0_i32, %c0_i32_0 : i32, i32
  }
  func.func @transform_2(%arg0: i32, %arg1: i32) -> (i32, i32) {
    %c0_i32 = arith.constant 0 : i32
    %c0_i32_0 = arith.constant 0 : i32
    %c0_i32_1 = arith.constant 0 : i32
    return %c0_i32, %c0_i32_0 : i32, i32
  }
  func.func @transform_3(%arg0: i32, %arg1: i32) -> (i32, i32, i32) {
    %c0_i32 = arith.constant 0 : i32
    %c0_i32_0 = arith.constant 0 : i32
    %c0_i32_1 = arith.constant 0 : i32
    return %arg0, %c0_i32, %c0_i32_0 : i32, i32, i32
  }
}

</mosaic_0001>

<llo_original>
// kernel: tpu_custom_call.1
$region0: #{tpu_custom_call.1}
  #allocation0 [shape = 'u32[]', space=smem, size = 0x4, offset = 0x4, fixed_abs, tag = 'smem constant byte address 0x4 - core index']
  #allocation1 [shape = 'u32[144,128]{1,0:T(1,128)}', space=vmem, size = 0x12000, scoped, tag = 'internal scratch']
  #allocation2 [shape = 'f32[2,64,128]{2,1,0:T(8,128)}', space=vmem, size = 0x10000, scoped, tag = 'scratch operand']
  #allocation3 [shape = 'f32[2,64,128]{2,1,0:T(8,128)}', space=vmem, size = 0x10000, scoped, tag = 'scratch operand']
  %s0 = inlined_call_operand.hbm [shape: f32[2,64,576], index: 0, kind: input, shape index: {}]
  %s1 = inlined_call_operand.vmem [shape: f32[64,4], index: 1, kind: input, shape index: {}]
  %s2 = inlined_call_operand.vmem [shape: f32[4,64], index: 2, kind: input, shape index: {}]
  %s3 = inlined_call_operand.vmem [shape: f32[2,64,1], index: 3, kind: output, shape index: {}]
  %s4 = sld [smem:[#allocation0]]
  $region34: #{tpu_custom_call.1} parent=0
    _
  %s6 = ssub.s32 1, %s4
  %s7 = scalar_select 0, %s6, %s4
  $region1: #{tpu_custom_call.1} parent=0
    #allocation4 [shape = 'u8[327680]{0}', space=vmem, size = 0x50000, scoped, tag = 'input window, operand 0, single buffered']
    #allocation5 [shape = 's32[1]{0}', space=sflag, size = 0x4, scoped, tag = 'scoped memory for tpu_custom_call.1']
    %8 = vsyncpa [#allocation5], 0
    // Predicated region
    $region2: #{tpu_custom_call.1} parent=1 // pred_check
      _
    $region3: #{tpu_custom_call.1} parent=1 // pred_check_branch
      %10 = sbr.rel (0) target = $region5
    $region4: #{tpu_custom_call.1} parent=1 // pred_region
      %s12 = ssub.s32 10240, 10240
      %13 = vsyncadd [#allocation5], %s12
      %s14 = sshll.u32 [#allocation4], 4
      %s15 = int_to_ptr.vmem [resolvable:$true] %s14
      %20 = dma.hbm_to_vmem [thread:$0]  %s0, 10240, %s15, [#allocation5], 640, 640, 40
    $region5: #{tpu_custom_call.1} parent=1 // pred_fallthru
      _
    // Predicated region
    $region6: #{tpu_custom_call.1} parent=1 // pred_check
      _
    $region7: #{tpu_custom_call.1} parent=1 // pred_check_branch
      %22 = sbr.rel (0) target = $region9
    $region8: #{tpu_custom_call.1} parent=1 // pred_region
      _
    $region9: #{tpu_custom_call.1} parent=1 // pred_fallthru
      _
    // Predicated region
    $region10: #{tpu_custom_call.1} parent=1 // pred_check
      _
    $region11: #{tpu_custom_call.1} parent=1 // pred_check_branch
      %24 = sbr.rel (0) target = $region13
    $region12: #{tpu_custom_call.1} parent=1 // pred_region
      _
    $region13: #{tpu_custom_call.1} parent=1 // pred_fallthru
      _
    // Predicated region
    $region14: #{tpu_custom_call.1} parent=1 // pred_check
      _
    $region15: #{tpu_custom_call.1} parent=1 // pred_check_branch
      %26 = sbr.rel (0) target = $region17
    $region16: #{tpu_custom_call.1} parent=1 // pred_region
      %27 = dma.done [#allocation5], 10240
    $region17: #{tpu_custom_call.1} parent=1 // pred_fallthru
      _
    %p28 = scmp.eq.s32.totalorder 0, 0
    // Predicated region
    $region18: #{tpu_custom_call.1} parent=1 // pred_check
      %p29 = pneg %p28
    $region19: #{tpu_custom_call.1} parent=1 // pred_check_branch
      %31 = sbr.rel (%p29) target = $region21
    $region20: #{tpu_custom_call.1} parent=1 // pred_region
      %32 = vst [vmem:[#allocation2] sm:$0xff] 0.0
      %33 = vst [vmem:[#allocation2 + $0x8] sm:$0xff] 0.0
      %34 = vst [vmem:[#allocation2 + $0x10] sm:$0xff] 0.0
      %35 = vst [vmem:[#allocation2 + $0x18] sm:$0xff] 0.0
      %36 = vst [vmem:[#allocation2 + $0x20] sm:$0xff] 0.0
      %37 = vst [vmem:[#allocation2 + $0x28] sm:$0xff] 0.0
      %38 = vst [vmem:[#allocation2 + $0x30] sm:$0xff] 0.0
      %39 = vst [vmem:[#allocation2 + $0x38] sm:$0xff] 0.0
      %40 = vst [vmem:[#allocation2 + $0x40] sm:$0xff] 0.0
      %41 = vst [vmem:[#allocation2 + $0x48] sm:$0xff] 0.0
      %42 = vst [vmem:[#allocation2 + $0x50] sm:$0xff] 0.0
      %43 = vst [vmem:[#allocation2 + $0x58] sm:$0xff] 0.0
      %44 = vst [vmem:[#allocation2 + $0x60] sm:$0xff] 0.0
      %45 = vst [vmem:[#allocation2 + $0x68] sm:$0xff] 0.0
      %46 = vst [vmem:[#allocation2 + $0x70] sm:$0xff] 0.0
      %47 = vst [vmem:[#allocation2 + $0x78] sm:$0xff] 0.0
      %48 = vst [vmem:[#allocation3] sm:$0xff] -inf
      %49 = vst [vmem:[#allocation3 + $0x8] sm:$0xff] -inf
      %50 = vst [vmem:[#allocation3 + $0x10] sm:$0xff] -inf
      %51 = vst [vmem:[#allocation3 + $0x18] sm:$0xff] -inf
      %52 = vst [vmem:[#allocation3 + $0x20] sm:$0xff] -inf
      %53 = vst [vmem:[#allocation3 + $0x28] sm:$0xff] -inf
      %54 = vst [vmem:[#allocation3 + $0x30] sm:$0xff] -inf
      %55 = vst [vmem:[#allocation3 + $0x38] sm:$0xff] -inf
      %56 = vst [vmem:[#allocation3 + $0x40] sm:$0xff] -inf
      %57 = vst [vmem:[#allocation3 + $0x48] sm:$0xff] -inf
      %58 = vst [vmem:[#allocation3 + $0x50] sm:$0xff] -inf
      %59 = vst [vmem:[#allocation3 + $0x58] sm:$0xff] -inf
      %60 = vst [vmem:[#allocation3 + $0x60] sm:$0xff] -inf
      %61 = vst [vmem:[#allocation3 + $0x68] sm:$0xff] -inf
      %62 = vst [vmem:[#allocation3 + $0x70] sm:$0xff] -inf
      %63 = vst [vmem:[#allocation3 + $0x78] sm:$0xff] -inf
    $region21: #{tpu_custom_call.1} parent=1 // pred_fallthru
      _
    %v64 = vld [vmem:[#allocation4] sm:$0xff]
    %v65 = vld [vmem:[#allocation4 + $0x28] sm:$0xff]
    %v66 = vld [vmem:[#allocation4 + $0x50] sm:$0xff]
    %v67 = vld [vmem:[#allocation4 + $0x78] sm:$0xff]
    %v68 = vld [vmem:[#allocation4 + $0xa0] sm:$0xff]
    %v69 = vld [vmem:[#allocation4 + $0xc8] sm:$0xff]
    %v70 = vld [vmem:[#allocation4 + $0xf0] sm:$0xff]
    %v71 = vld [vmem:[#allocation4 + $0x118] sm:$0xff]
    %v72 = vld [vmem:[#allocation4 + $0x140] sm:$0xff]
    %v73 = vld [vmem:[#allocation4 + $0x168] sm:$0xff]
    %v74 = vld [vmem:[#allocation4 + $0x190] sm:$0xff]
    %v75 = vld [vmem:[#allocation4 + $0x1b8] sm:$0xff]
    %v76 = vld [vmem:[#allocation4 + $0x1e0] sm:$0xff]
    %v77 = vld [vmem:[#allocation4 + $0x208] sm:$0xff]
    %v78 = vld [vmem:[#allocation4 + $0x230] sm:$0xff]
    %v79 = vld [vmem:[#allocation4 + $0x258] sm:$0xff]
    %v80 = vld [vmem:[#allocation4 + $0x8] sm:$0xff]
    %v81 = vld [vmem:[#allocation4 + $0x30] sm:$0xff]
    %v82 = vld [vmem:[#allocation4 + $0x58] sm:$0xff]
    %v83 = vld [vmem:[#allocation4 + $0x80] sm:$0xff]
    %v84 = vld [vmem:[#allocation4 + $0xa8] sm:$0xff]
    %v85 = vld [vmem:[#allocation4 + $0xd0] sm:$0xff]
    %v86 = vld [vmem:[#allocation4 + $0xf8] sm:$0xff]
    %v87 = vld [vmem:[#allocation4 + $0x120] sm:$0xff]
    %v88 = vld [vmem:[#allocation4 + $0x148] sm:$0xff]
    %v89 = vld [vmem:[#allocation4 + $0x170] sm:$0xff]
    %v90 = vld [vmem:[#allocation4 + $0x198] sm:$0xff]
    %v91 = vld [vmem:[#allocation4 + $0x1c0] sm:$0xff]
    %v92 = vld [vmem:[#allocation4 + $0x1e8] sm:$0xff]
    %v93 = vld [vmem:[#allocation4 + $0x210] sm:$0xff]
    %v94 = vld [vmem:[#allocation4 + $0x238] sm:$0xff]
    %v95 = vld [vmem:[#allocation4 + $0x260] sm:$0xff]
    %v96 = vld [vmem:[#allocation2] sm:$0xff]
    %v97 = vld [vmem:[#allocation2 + $0x8] sm:$0xff]
    %v98 = vld [vmem:[#allocation2 + $0x10] sm:$0xff]
    %v99 = vld [vmem:[#allocation2 + $0x18] sm:$0xff]
    %v100 = vld [vmem:[#allocation2 + $0x20] sm:$0xff]
    %v101 = vld [vmem:[#allocation2 + $0x28] sm:$0xff]
    %v102 = vld [vmem:[#allocation2 + $0x30] sm:$0xff]
    %v103 = vld [vmem:[#allocation2 + $0x38] sm:$0xff]
    %v104 = vld [vmem:[#allocation2 + $0x40] sm:$0xff]
    %v105 = vld [vmem:[#allocation2 + $0x48] sm:$0xff]
    %v106 = vld [vmem:[#allocation2 + $0x50] sm:$0xff]
    %v107 = vld [vmem:[#allocation2 + $0x58] sm:$0xff]
    %v108 = vld [vmem:[#allocation2 + $0x60] sm:$0xff]
    %v109 = vld [vmem:[#allocation2 + $0x68] sm:$0xff]
    %v110 = vld [vmem:[#allocation2 + $0x70] sm:$0xff]
    %v111 = vld [vmem:[#allocation2 + $0x78] sm:$0xff]
    %v112 = vadd.f32 %v64, %v80
    %v113 = vadd.f32 %v65, %v81
    %v114 = vadd.f32 %v66, %v82
    %v115 = vadd.f32 %v67, %v83
    %v116 = vadd.f32 %v68, %v84
    %v117 = vadd.f32 %v69, %v85
    %v118 = vadd.f32 %v70, %v86
    %v119 = vadd.f32 %v71, %v87
    %v120 = vadd.f32 %v72, %v88
    %v121 = vadd.f32 %v73, %v89
    %v122 = vadd.f32 %v74, %v90
    %v123 = vadd.f32 %v75, %v91
    %v124 = vadd.f32 %v76, %v92
    %v125 = vadd.f32 %v77, %v93
    %v126 = vadd.f32 %v78, %v94
    %v127 = vadd.f32 %v79, %v95
    %v128 = vadd.f32 %v96, %v112
    %v129 = vadd.f32 %v97, %v113
    %v130 = vadd.f32 %v98, %v114
    %v131 = vadd.f32 %v99, %v115
    %v132 = vadd.f32 %v100, %v116
    %v133 = vadd.f32 %v101, %v117
    %v134 = vadd.f32 %v102, %v118
    %v135 = vadd.f32 %v103, %v119
    %v136 = vadd.f32 %v104, %v120
    %v137 = vadd.f32 %v105, %v121
    %v138 = vadd.f32 %v106, %v122
    %v139 = vadd.f32 %v107, %v123
    %v140 = vadd.f32 %v108, %v124
    %v141 = vadd.f32 %v109, %v125
    %v142 = vadd.f32 %v110, %v126
    %v143 = vadd.f32 %v111, %v127
    %144 = vst [vmem:[#allocation2] sm:$0xff] %v128
    %145 = vst [vmem:[#allocation2 + $0x8] sm:$0xff] %v129
    %146 = vst [vmem:[#allocation2 + $0x10] sm:$0xff] %v130
    %147 = vst [vmem:[#allocation2 + $0x18] sm:$0xff] %v131
    %148 = vst [vmem:[#allocation2 + $0x20] sm:$0xff] %v132
    %149 = vst [vmem:[#allocation2 + $0x28] sm:$0xff] %v133
    %150 = vst [vmem:[#allocation2 + $0x30] sm:$0xff] %v134
    %151 = vst [vmem:[#allocation2 + $0x38] sm:$0xff] %v135
    %152 = vst [vmem:[#allocation2 + $0x40] sm:$0xff] %v136
    %153 = vst [vmem:[#allocation2 + $0x48] sm:$0xff] %v137
    %154 = vst [vmem:[#allocation2 + $0x50] sm:$0xff] %v138
    %155 = vst [vmem:[#allocation2 + $0x58] sm:$0xff] %v139
    %156 = vst [vmem:[#allocation2 + $0x60] sm:$0xff] %v140
    %157 = vst [vmem:[#allocation2 + $0x68] sm:$0xff] %v141
    %158 = vst [vmem:[#allocation2 + $0x70] sm:$0xff] %v142
    %159 = vst [vmem:[#allocation2 + $0x78] sm:$0xff] %v143
    %v160 = vld [vmem:[#allocation3] sm:$0xff]
    %v161 = vld [vmem:[#allocation3 + $0x8] sm:$0xff]
    %v162 = vld [vmem:[#allocation3 + $0x10] sm:$0xff]
    %v163 = vld [vmem:[#allocation3 + $0x18] sm:$0xff]
    %v164 = vld [vmem:[#allocation3 + $0x20] sm:$0xff]
    %v165 = vld [vmem:[#allocation3 + $0x28] sm:$0xff]
    %v166 = vld [vmem:[#allocation3 + $0x30] sm:$0xff]
    %v167 = vld [vmem:[#allocation3 + $0x38] sm:$0xff]
    %v168 = vld [vmem:[#allocation3 + $0x40] sm:$0xff]
    %v169 = vld [vmem:[#allocation3 + $0x48] sm:$0xff]
    %v170 = vld [vmem:[#allocation3 + $0x50] sm:$0xff]
    %v171 = vld [vmem:[#allocation3 + $0x58] sm:$0xff]
    %v172 = vld [vmem:[#allocation3 + $0x60] sm:$0xff]
    %v173 = vld [vmem:[#allocation3 + $0x68] sm:$0xff]
    %v174 = vld [vmem:[#allocation3 + $0x70] sm:$0xff]
    %v175 = vld [vmem:[#allocation3 + $0x78] sm:$0xff]
    %v176 = vmax.f32 %v64, %v80
    %v177 = vmax.f32 %v65, %v81
    %v178 = vmax.f32 %v66, %v82
    %v179 = vmax.f32 %v67, %v83
    %v180 = vmax.f32 %v68, %v84
    %v181 = vmax.f32 %v69, %v85
    %v182 = vmax.f32 %v70, %v86
    %v183 = vmax.f32 %v71, %v87
    %v184 = vmax.f32 %v72, %v88
    %v185 = vmax.f32 %v73, %v89
    %v186 = vmax.f32 %v74, %v90
    %v187 = vmax.f32 %v75, %v91
    %v188 = vmax.f32 %v76, %v92
    %v189 = vmax.f32 %v77, %v93
    %v190 = vmax.f32 %v78, %v94
    %v191 = vmax.f32 %v79, %v95
    %v192 = vmax.f32 %v160, %v176
    %v193 = vmax.f32 %v161, %v177
    %v194 = vmax.f32 %v162, %v178
    %v195 = vmax.f32 %v163, %v179
    %v196 = vmax.f32 %v164, %v180
    %v197 = vmax.f32 %v165, %v181
    %v198 = vmax.f32 %v166, %v182
    %v199 = vmax.f32 %v167, %v183
    %v200 = vmax.f32 %v168, %v184
    %v201 = vmax.f32 %v169, %v185
    %v202 = vmax.f32 %v170, %v186
    %v203 = vmax.f32 %v171, %v187
    %v204 = vmax.f32 %v172, %v188
    %v205 = vmax.f32 %v173, %v189
    %v206 = vmax.f32 %v174, %v190
    %v207 = vmax.f32 %v175, %v191
    %208 = vst [vmem:[#allocation3] sm:$0xff] %v192
    %209 = vst [vmem:[#allocation3 + $0x8] sm:$0xff] %v193
    %210 = vst [vmem:[#allocation3 + $0x10] sm:$0xff] %v194
    %211 = vst [vmem:[#allocation3 + $0x18] sm:$0xff] %v195
    %212 = vst [vmem:[#allocation3 + $0x20] sm:$0xff] %v196
    %213 = vst [vmem:[#allocation3 + $0x28] sm:$0xff] %v197
    %214 = vst [vmem:[#allocation3 + $0x30] sm:$0xff] %v198
    %215 = vst [vmem:[#allocation3 + $0x38] sm:$0xff] %v199
    %216 = vst [vmem:[#allocation3 + $0x40] sm:$0xff] %v200
    %217 = vst [vmem:[#allocation3 + $0x48] sm:$0xff] %v201
    %218 = vst [vmem:[#allocation3 + $0x50] sm:$0xff] %v202
    %219 = vst [vmem:[#allocation3 + $0x58] sm:$0xff] %v203
    %220 = vst [vmem:[#allocation3 + $0x60] sm:$0xff] %v204
    %221 = vst [vmem:[#allocation3 + $0x68] sm:$0xff] %v205
    %222 = vst [vmem:[#allocation3 + $0x70] sm:$0xff] %v206
    %223 = vst [vmem:[#allocation3 + $0x78] sm:$0xff] %v207
    %v224 = vld [vmem:[#allocation4 + $0x10] sm:$0xff]
    %v225 = vld [vmem:[#allocation4 + $0x38] sm:$0xff]
    %v226 = vld [vmem:[#allocation4 + $0x60] sm:$0xff]
    %v227 = vld [vmem:[#allocation4 + $0x88] sm:$0xff]
    %v228 = vld [vmem:[#allocation4 + $0xb0] sm:$0xff]
    %v229 = vld [vmem:[#allocation4 + $0xd8] sm:$0xff]
    %v230 = vld [vmem:[#allocation4 + $0x100] sm:$0xff]
    %v231 = vld [vmem:[#allocation4 + $0x128] sm:$0xff]
    %v232 = vld [vmem:[#allocation4 + $0x150] sm:$0xff]
    %v233 = vld [vmem:[#allocation4 + $0x178] sm:$0xff]
    %v234 = vld [vmem:[#allocation4 + $0x1a0] sm:$0xff]
    %v235 = vld [vmem:[#allocation4 + $0x1c8] sm:$0xff]
    %v236 = vld [vmem:[#allocation4 + $0x1f0] sm:$0xff]
    %v237 = vld [vmem:[#allocation4 + $0x218] sm:$0xff]
    %v238 = vld [vmem:[#allocation4 + $0x240] sm:$0xff]
    %v239 = vld [vmem:[#allocation4 + $0x268] sm:$0xff]
    %v240 = vld [vmem:[#allocation4 + $0x18] sm:$0xff]
    %v241 = vld [vmem:[#allocation4 + $0x40] sm:$0xff]
    %v242 = vld [vmem:[#allocation4 + $0x68] sm:$0xff]
    %v243 = vld [vmem:[#allocation4 + $0x90] sm:$0xff]
    %v244 = vld [vmem:[#allocation4 + $0xb8] sm:$0xff]
    %v245 = vld [vmem:[#allocation4 + $0xe0] sm:$0xff]
    %v246 = vld [vmem:[#allocation4 + $0x108] sm:$0xff]
    %v247 = vld [vmem:[#allocation4 + $0x130] sm:$0xff]
    %v248 = vld [vmem:[#allocation4 + $0x158] sm:$0xff]
    %v249 = vld [vmem:[#allocation4 + $0x180] sm:$0xff]
    %v250 = vld [vmem:[#allocation4 + $0x1a8] sm:$0xff]
    %v251 = vld [vmem:[#allocation4 + $0x1d0] sm:$0xff]
    %v252 = vld [vmem:[#allocation4 + $0x1f8] sm:$0xff]
    %v253 = vld [vmem:[#allocation4 + $0x220] sm:$0xff]
    %v254 = vld [vmem:[#allocation4 + $0x248] sm:$0xff]
    %v255 = vld [vmem:[#allocation4 + $0x270] sm:$0xff]
    %v256 = vld [vmem:[#allocation2] sm:$0xff]
    %v257 = vld [vmem:[#allocation2 + $0x8] sm:$0xff]
    %v258 = vld [vmem:[#allocation2 + $0x10] sm:$0xff]
    %v259 = vld [vmem:[#allocation2 + $0x18] sm:$0xff]
    %v260 = vld [vmem:[#allocation2 + $0x20] sm:$0xff]
    %v261 = vld [vmem:[#allocation2 + $0x28] sm:$0xff]
    %v262 = vld [vmem:[#allocation2 + $0x30] sm:$0xff]
    %v263 = vld [vmem:[#allocation2 + $0x38] sm:$0xff]
    %v264 = vld [vmem:[#allocation2 + $0x40] sm:$0xff]
    %v265 = vld [vmem:[#allocation2 + $0x48] sm:$0xff]
    %v266 = vld [vmem:[#allocation2 + $0x50] sm:$0xff]
    %v267 = vld [vmem:[#allocation2 + $0x58] sm:$0xff]
    %v268 = vld [vmem:[#allocation2 + $0x60] sm:$0xff]
    %v269 = vld [vmem:[#allocation2 + $0x68] sm:$0xff]
    %v270 = vld [vmem:[#allocation2 + $0x70] sm:$0xff]
    %v271 = vld [vmem:[#allocation2 + $0x78] sm:$0xff]
    %v272 = vadd.f32 %v224, %v240
    %v273 = vadd.f32 %v225, %v241
    %v274 = vadd.f32 %v226, %v242
    %v275 = vadd.f32 %v227, %v243
    %v276 = vadd.f32 %v228, %v244
    %v277 = vadd.f32 %v229, %v245
    %v278 = vadd.f32 %v230, %v246
    %v279 = vadd.f32 %v231, %v247
    %v280 = vadd.f32 %v232, %v248
    %v281 = vadd.f32 %v233, %v249
    %v282 = vadd.f32 %v234, %v250
    %v283 = vadd.f32 %v235, %v251
    %v284 = vadd.f32 %v236, %v252
    %v285 = vadd.f32 %v237, %v253
    %v286 = vadd.f32 %v238, %v254
    %v287 = vadd.f32 %v239, %v255
    %v288 = vadd.f32 %v256, %v272
    %v289 = vadd.f32 %v257, %v273
    %v290 = vadd.f32 %v258, %v274
    %v291 = vadd.f32 %v259, %v275
    %v292 = vadd.f32 %v260, %v276
    %v293 = vadd.f32 %v261, %v277
    %v294 = vadd.f32 %v262, %v278
    %v295 = vadd.f32 %v263, %v279
    %v296 = vadd.f32 %v264, %v280
    %v297 = vadd.f32 %v265, %v281
    %v298 = vadd.f32 %v266, %v282
    %v299 = vadd.f32 %v267, %v283
    %v300 = vadd.f32 %v268, %v284
    %v301 = vadd.f32 %v269, %v285
    %v302 = vadd.f32 %v270, %v286
    %v303 = vadd.f32 %v271, %v287
    %304 = vst [vmem:[#allocation2] sm:$0xff] %v288
    %305 = vst [vmem:[#allocation2 + $0x8] sm:$0xff] %v289
    %306 = vst [vmem:[#allocation2 + $0x10] sm:$0xff] %v290
    %307 = vst [vmem:[#allocation2 + $0x18] sm:$0xff] %v291
    %308 = vst [vmem:[#allocation2 + $0x20] sm:$0xff] %v292
    %309 = vst [vmem:[#allocation2 + $0x28] sm:$0xff] %v293
    %310 = vst [vmem:[#allocation2 + $0x30] sm:$0xff] %v294
    %311 = vst [vmem:[#allocation2 + $0x38] sm:$0xff] %v295
    %312 = vst [vmem:[#allocation2 + $0x40] sm:$0xff] %v296
    %313 = vst [vmem:[#allocation2 + $0x48] sm:$0xff] %v297
    %314 = vst [vmem:[#allocation2 + $0x50] sm:$0xff] %v298
    %315 = vst [vmem:[#allocation2 + $0x58] sm:$0xff] %v299
    %316 = vst [vmem:[#allocation2 + $0x60] sm:$0xff] %v300
    %317 = vst [vmem:[#allocation2 + $0x68] sm:$0xff] %v301
    %318 = vst [vmem:[#allocation2 + $0x70] sm:$0xff] %v302
    %319 = vst [vmem:[#allocation2 + $0x78] sm:$0xff] %v303
    %v320 = vld [vmem:[#allocation3] sm:$0xff]
    %v321 = vld [vmem:[#allocation3 + $0x8] sm:$0xff]
    %v322 = vld [vmem:[#allocation3 + $0x10] sm:$0xff]
    %v323 = vld [vmem:[#allocation3 + $0x18] sm:$0xff]
    %v324 = vld [vmem:[#allocation3 + $0x20] sm:$0xff]
    %v325 = vld [vmem:[#allocation3 + $0x28] sm:$0xff]
    %v326 = vld [vmem:[#allocation3 + $0x30] sm:$0xff]
    %v327 = vld [vmem:[#allocation3 + $0x38] sm:$0xff]
    %v328 = vld [vmem:[#allocation3 + $0x40] sm:$0xff]
    %v329 = vld [vmem:[#allocation3 + $0x48] sm:$0xff]
    %v330 = vld [vmem:[#allocation3 + $0x50] sm:$0xff]
    %v331 = vld [vmem:[#allocation3 + $0x58] sm:$0xff]
    %v332 = vld [vmem:[#allocation3 + $0x60] sm:$0xff]
    %v333 = vld [vmem:[#allocation3 + $0x68] sm:$0xff]
    %v334 = vld [vmem:[#allocation3 + $0x70] sm:$0xff]
    %v335 = vld [vmem:[#allocation3 + $0x78] sm:$0xff]
    %v336 = vmax.f32 %v224, %v240
    %v337 = vmax.f32 %v225, %v241
    %v338 = vmax.f32 %v226, %v242
    %v339 = vmax.f32 %v227, %v243
    %v340 = vmax.f32 %v228, %v244
    %v341 = vmax.f32 %v229, %v245
    %v342 = vmax.f32 %v230, %v246
    %v343 = vmax.f32 %v231, %v247
    %v344 = vmax.f32 %v232, %v248
    %v345 = vmax.f32 %v233, %v249
    %v346 = vmax.f32 %v234, %v250
    %v347 = vmax.f32 %v235, %v251
    %v348 = vmax.f32 %v236, %v252
    %v349 = vmax.f32 %v237, %v253
    %v350 = vmax.f32 %v238, %v254
    %v351 = vmax.f32 %v239, %v255
    %v352 = vmax.f32 %v320, %v336
    %v353 = vmax.f32 %v321, %v337
    %v354 = vmax.f32 %v322, %v338
    %v355 = vmax.f32 %v323, %v339
    %v356 = vmax.f32 %v324, %v340
    %v357 = vmax.f32 %v325, %v341
    %v358 = vmax.f32 %v326, %v342
    %v359 = vmax.f32 %v327, %v343
    %v360 = vmax.f32 %v328, %v344
    %v361 = vmax.f32 %v329, %v345
    %v362 = vmax.f32 %v330, %v346
    %v363 = vmax.f32 %v331, %v347
    %v364 = vmax.f32 %v332, %v348
    %v365 = vmax.f32 %v333, %v349
    %v366 = vmax.f32 %v334, %v350
    %v367 = vmax.f32 %v335, %v351
    %368 = vst [vmem:[#allocation3] sm:$0xff] %v352
    %369 = vst [vmem:[#allocation3 + $0x8] sm:$0xff] %v353
    %370 = vst [vmem:[#allocation3 + $0x10] sm:$0xff] %v354
    %371 = vst [vmem:[#allocation3 + $0x18] sm:$0xff] %v355
    %372 = vst [vmem:[#allocation3 + $0x20] sm:$0xff] %v356
    %373 = vst [vmem:[#allocation3 + $0x28] sm:$0xff] %v357
    %374 = vst [vmem:[#allocation3 + $0x30] sm:$0xff] %v358
    %375 = vst [vmem:[#allocation3 + $0x38] sm:$0xff] %v359
    %376 = vst [vmem:[#allocation3 + $0x40] sm:$0xff] %v360
    %377 = vst [vmem:[#allocation3 + $0x48] sm:$0xff] %v361
    %378 = vst [vmem:[#allocation3 + $0x50] sm:$0xff] %v362
    %379 = vst [vmem:[#allocation3 + $0x58] sm:$0xff] %v363
    %380 = vst [vmem:[#allocation3 + $0x60] sm:$0xff] %v364
    %381 = vst [vmem:[#allocation3 + $0x68] sm:$0xff] %v365
    %382 = vst [vmem:[#allocation3 + $0x70] sm:$0xff] %v366
    %383 = vst [vmem:[#allocation3 + $0x78] sm:$0xff] %v367
    %v384 = vld [vmem:[#allocation4 + $0x20] sm:$0xff]
    %v385 = vld [vmem:[#allocation4 + $0x48] sm:$0xff]
    %v386 = vld [vmem:[#allocation4 + $0x70] sm:$0xff]
    %v387 = vld [vmem:[#allocation4 + $0x98] sm:$0xff]
    %v388 = vld [vmem:[#allocation4 + $0xc0] sm:$0xff]
    %v389 = vld [vmem:[#allocation4 + $0xe8] sm:$0xff]
    %v390 = vld [vmem:[#allocation4 + $0x110] sm:$0xff]
    %v391 = vld [vmem:[#allocation4 + $0x138] sm:$0xff]
    %v392 = vld [vmem:[#allocation4 + $0x160] sm:$0xff]
    %v393 = vld [vmem:[#allocation4 + $0x188] sm:$0xff]
    %v394 = vld [vmem:[#allocation4 + $0x1b0] sm:$0xff]
    %v395 = vld [vmem:[#allocation4 + $0x1d8] sm:$0xff]
    %v396 = vld [vmem:[#allocation4 + $0x200] sm:$0xff]
    %v397 = vld [vmem:[#allocation4 + $0x228] sm:$0xff]
    %v398 = vld [vmem:[#allocation4 + $0x250] sm:$0xff]
    %v399 = vld [vmem:[#allocation4 + $0x278] sm:$0xff]
    %v400 = vld [vmem:[#allocation2] sm:$0xff]
    %v401 = vld [vmem:[#allocation2 + $0x8] sm:$0xff]
    %v402 = vld [vmem:[#allocation2 + $0x10] sm:$0xff]
    %v403 = vld [vmem:[#allocation2 + $0x18] sm:$0xff]
    %v404 = vld [vmem:[#allocation2 + $0x20] sm:$0xff]
    %v405 = vld [vmem:[#allocation2 + $0x28] sm:$0xff]
    %v406 = vld [vmem:[#allocation2 + $0x30] sm:$0xff]
    %v407 = vld [vmem:[#allocation2 + $0x38] sm:$0xff]
    %v408 = vld [vmem:[#allocation2 + $0x40] sm:$0xff]
    %v409 = vld [vmem:[#allocation2 + $0x48] sm:$0xff]
    %v410 = vld [vmem:[#allocation2 + $0x50] sm:$0xff]
    %v411 = vld [vmem:[#allocation2 + $0x58] sm:$0xff]
    %v412 = vld [vmem:[#allocation2 + $0x60] sm:$0xff]
    %v413 = vld [vmem:[#allocation2 + $0x68] sm:$0xff]
    %v414 = vld [vmem:[#allocation2 + $0x70] sm:$0xff]
    %v415 = vld [vmem:[#allocation2 + $0x78] sm:$0xff]
    %v416 = vadd.f32 %v400, %v384
    %v417 = vadd.f32 %v401, %v385
    %v418 = vadd.f32 %v402, %v386
    %v419 = vadd.f32 %v403, %v387
    %v420 = vadd.f32 %v404, %v388
    %v421 = vadd.f32 %v405, %v389
    %v422 = vadd.f32 %v406, %v390
    %v423 = vadd.f32 %v407, %v391
    %v424 = vadd.f32 %v408, %v392
    %v425 = vadd.f32 %v409, %v393
    %v426 = vadd.f32 %v410, %v394
    %v427 = vadd.f32 %v411, %v395
    %v428 = vadd.f32 %v412, %v396
    %v429 = vadd.f32 %v413, %v397
    %v430 = vadd.f32 %v414, %v398
    %v431 = vadd.f32 %v415, %v399
    %vm432 = vcmask 523264
    %433 = vst.msk [vmem:[#allocation2] sm:$0xff] %vm432, %v416
    %434 = vst.msk [vmem:[#allocation2 + $0x8] sm:$0xff] %vm432, %v417
    %435 = vst.msk [vmem:[#allocation2 + $0x10] sm:$0xff] %vm432, %v418
    %436 = vst.msk [vmem:[#allocation2 + $0x18] sm:$0xff] %vm432, %v419
    %437 = vst.msk [vmem:[#allocation2 + $0x20] sm:$0xff] %vm432, %v420
    %438 = vst.msk [vmem:[#allocation2 + $0x28] sm:$0xff] %vm432, %v421
    %439 = vst.msk [vmem:[#allocation2 + $0x30] sm:$0xff] %vm432, %v422
    %440 = vst.msk [vmem:[#allocation2 + $0x38] sm:$0xff] %vm432, %v423
    %441 = vst.msk [vmem:[#allocation2 + $0x40] sm:$0xff] %vm432, %v424
    %442 = vst.msk [vmem:[#allocation2 + $0x48] sm:$0xff] %vm432, %v425
    %443 = vst.msk [vmem:[#allocation2 + $0x50] sm:$0xff] %vm432, %v426
    %444 = vst.msk [vmem:[#allocation2 + $0x58] sm:$0xff] %vm432, %v427
    %445 = vst.msk [vmem:[#allocation2 + $0x60] sm:$0xff] %vm432, %v428
    %446 = vst.msk [vmem:[#allocation2 + $0x68] sm:$0xff] %vm432, %v429
    %447 = vst.msk [vmem:[#allocation2 + $0x70] sm:$0xff] %vm432, %v430
    %448 = vst.msk [vmem:[#allocation2 + $0x78] sm:$0xff] %vm432, %v431
    %v449 = vld [vmem:[#allocation3] sm:$0xff]
    %v450 = vld [vmem:[#allocation3 + $0x8] sm:$0xff]
    %v451 = vld [vmem:[#allocation3 + $0x10] sm:$0xff]
    %v452 = vld [vmem:[#allocation3 + $0x18] sm:$0xff]
    %v453 = vld [vmem:[#allocation3 + $0x20] sm:$0xff]
    %v454 = vld [vmem:[#allocation3 + $0x28] sm:$0xff]
    %v455 = vld [vmem:[#allocation3 + $0x30] sm:$0xff]
    %v456 = vld [vmem:[#allocation3 + $0x38] sm:$0xff]
    %v457 = vld [vmem:[#allocation3 + $0x40] sm:$0xff]
    %v458 = vld [vmem:[#allocation3 + $0x48] sm:$0xff]
    %v459 = vld [vmem:[#allocation3 + $0x50] sm:$0xff]
    %v460 = vld [vmem:[#allocation3 + $0x58] sm:$0xff]
    %v461 = vld [vmem:[#allocation3 + $0x60] sm:$0xff]
    %v462 = vld [vmem:[#allocation3 + $0x68] sm:$0xff]
    %v463 = vld [vmem:[#allocation3 + $0x70] sm:$0xff]
    %v464 = vld [vmem:[#allocation3 + $0x78] sm:$0xff]
    %v465 = vmax.f32 %v449, %v384
    %v466 = vmax.f32 %v450, %v385
    %v467 = vmax.f32 %v451, %v386
    %v468 = vmax.f32 %v452, %v387
    %v469 = vmax.f32 %v453, %v388
    %v470 = vmax.f32 %v454, %v389
    %v471 = vmax.f32 %v455, %v390
    %v472 = vmax.f32 %v456, %v391
    %v473 = vmax.f32 %v457, %v392
    %v474 = vmax.f32 %v458, %v393
    %v475 = vmax.f32 %v459, %v394
    %v476 = vmax.f32 %v460, %v395
    %v477 = vmax.f32 %v461, %v396
    %v478 = vmax.f32 %v462, %v397
    %v479 = vmax.f32 %v463, %v398
    %v480 = vmax.f32 %v464, %v399
    %481 = vst.msk [vmem:[#allocation3] sm:$0xff] %vm432, %v465
    %482 = vst.msk [vmem:[#allocation3 + $0x8] sm:$0xff] %vm432, %v466
    %483 = vst.msk [vmem:[#allocation3 + $0x10] sm:$0xff] %vm432, %v467
    %484 = vst.msk [vmem:[#allocation3 + $0x18] sm:$0xff] %vm432, %v468
    %485 = vst.msk [vmem:[#allocation3 + $0x20] sm:$0xff] %vm432, %v469
    %486 = vst.msk [vmem:[#allocation3 + $0x28] sm:$0xff] %vm432, %v470
    %487 = vst.msk [vmem:[#allocation3 + $0x30] sm:$0xff] %vm432, %v471
    %488 = vst.msk [vmem:[#allocation3 + $0x38] sm:$0xff] %vm432, %v472
    %489 = vst.msk [vmem:[#allocation3 + $0x40] sm:$0xff] %vm432, %v473
    %490 = vst.msk [vmem:[#allocation3 + $0x48] sm:$0xff] %vm432, %v474
    %491 = vst.msk [vmem:[#allocation3 + $0x50] sm:$0xff] %vm432, %v475
    %492 = vst.msk [vmem:[#allocation3 + $0x58] sm:$0xff] %vm432, %v476
    %493 = vst.msk [vmem:[#allocation3 + $0x60] sm:$0xff] %vm432, %v477
    %494 = vst.msk [vmem:[#allocation3 + $0x68] sm:$0xff] %vm432, %v478
    %495 = vst.msk [vmem:[#allocation3 + $0x70] sm:$0xff] %vm432, %v479
    %496 = vst.msk [vmem:[#allocation3 + $0x78] sm:$0xff] %vm432, %v480
    // Predicated region
    $region22: #{tpu_custom_call.1} parent=1 // pred_check
      %p497 = pneg %p28
    $region23: #{tpu_custom_call.1} parent=1 // pred_check_branch
      %499 = sbr.rel (%p497) target = $region25
    $region24: #{tpu_custom_call.1} parent=1 // pred_region
      %v500 = vld [vmem:[#allocation2] sm:$0xff]
      %v501 = vld [vmem:[#allocation2 + $0x8] sm:$0xff]
      %v502 = vld [vmem:[#allocation2 + $0x10] sm:$0xff]
      %v503 = vld [vmem:[#allocation2 + $0x18] sm:$0xff]
      %v504 = vld [vmem:[#allocation2 + $0x20] sm:$0xff]
      %v505 = vld [vmem:[#allocation2 + $0x28] sm:$0xff]
      %v506 = vld [vmem:[#allocation2 + $0x30] sm:$0xff]
      %v507 = vld [vmem:[#allocation2 + $0x38] sm:$0xff]
      %v508 = vld [vmem:[#allocation2 + $0x40] sm:$0xff]
      %v509 = vld [vmem:[#allocation2 + $0x48] sm:$0xff]
      %v510 = vld [vmem:[#allocation2 + $0x50] sm:$0xff]
      %v511 = vld [vmem:[#allocation2 + $0x58] sm:$0xff]
      %v512 = vld [vmem:[#allocation2 + $0x60] sm:$0xff]
      %v513 = vld [vmem:[#allocation2 + $0x68] sm:$0xff]
      %v514 = vld [vmem:[#allocation2 + $0x70] sm:$0xff]
      %v515 = vld [vmem:[#allocation2 + $0x78] sm:$0xff]
      %516 = vadd.xlane.f32.xlu0 %v500
      %v517 = vpop.xlane.xlu0 %516
      %518 = vadd.xlane.f32.xlu0 %v501
      %v519 = vpop.xlane.xlu0 %518
      %520 = vadd.xlane.f32.xlu0 %v502
      %v521 = vpop.xlane.xlu0 %520
      %522 = vadd.xlane.f32.xlu0 %v503
      %v523 = vpop.xlane.xlu0 %522
      %524 = vadd.xlane.f32.xlu0 %v504
      %v525 = vpop.xlane.xlu0 %524
      %526 = vadd.xlane.f32.xlu0 %v505
      %v527 = vpop.xlane.xlu0 %526
      %528 = vadd.xlane.f32.xlu0 %v506
      %v529 = vpop.xlane.xlu0 %528
      %530 = vadd.xlane.f32.xlu0 %v507
      %v531 = vpop.xlane.xlu0 %530
      %532 = vadd.xlane.f32.xlu0 %v508
      %v533 = vpop.xlane.xlu0 %532
      %534 = vadd.xlane.f32.xlu0 %v509
      %v535 = vpop.xlane.xlu0 %534
      %536 = vadd.xlane.f32.xlu0 %v510
      %v537 = vpop.xlane.xlu0 %536
      %538 = vadd.xlane.f32.xlu0 %v511
      %v539 = vpop.xlane.xlu0 %538
      %540 = vadd.xlane.f32.xlu0 %v512
      %v541 = vpop.xlane.xlu0 %540
      %542 = vadd.xlane.f32.xlu0 %v513
      %v543 = vpop.xlane.xlu0 %542
      %544 = vadd.xlane.f32.xlu0 %v514
      %v545 = vpop.xlane.xlu0 %544
      %546 = vadd.xlane.f32.xlu0 %v515
      %v547 = vpop.xlane.xlu0 %546
      %v548 = vmul.f32 %v517, 0.0017361111
      %v549 = vmul.f32 %v519, 0.0017361111
      %v550 = vmul.f32 %v521, 0.0017361111
      %v551 = vmul.f32 %v523, 0.0017361111
      %v552 = vmul.f32 %v525, 0.0017361111
      %v553 = vmul.f32 %v527, 0.0017361111
      %v554 = vmul.f32 %v529, 0.0017361111
      %v555 = vmul.f32 %v531, 0.0017361111
      %v556 = vmul.f32 %v533, 0.0017361111
      %v557 = vmul.f32 %v535, 0.0017361111
      %v558 = vmul.f32 %v537, 0.0017361111
      %v559 = vmul.f32 %v539, 0.0017361111
      %v560 = vmul.f32 %v541, 0.0017361111
      %v561 = vmul.f32 %v543, 0.0017361111
      %v562 = vmul.f32 %v545, 0.0017361111
      %v563 = vmul.f32 %v547, 0.0017361111
      %v564 = vld [vmem:[#allocation3] sm:$0xff]
      %v565 = vld [vmem:[#allocation3 + $0x8] sm:$0xff]
      %v566 = vld [vmem:[#allocation3 + $0x10] sm:$0xff]
      %v567 = vld [vmem:[#allocation3 + $0x18] sm:$0xff]
      %v568 = vld [vmem:[#allocation3 + $0x20] sm:$0xff]
      %v569 = vld [vmem:[#allocation3 + $0x28] sm:$0xff]
      %v570 = vld [vmem:[#allocation3 + $0x30] sm:$0xff]
      %v571 = vld [vmem:[#allocation3 + $0x38] sm:$0xff]
      %v572 = vld [vmem:[#allocation3 + $0x40] sm:$0xff]
      %v573 = vld [vmem:[#allocation3 + $0x48] sm:$0xff]
      %v574 = vld [vmem:[#allocation3 + $0x50] sm:$0xff]
      %v575 = vld [vmem:[#allocation3 + $0x58] sm:$0xff]
      %v576 = vld [vmem:[#allocation3 + $0x60] sm:$0xff]
      %v577 = vld [vmem:[#allocation3 + $0x68] sm:$0xff]
      %v578 = vld [vmem:[#allocation3 + $0x70] sm:$0xff]
      %v579 = vld [vmem:[#allocation3 + $0x78] sm:$0xff]
      %580 = vmax.xlane.f32.xlu0 %v564
      %v581 = vpop.xlane.xlu0 %580
      %582 = vmax.xlane.f32.xlu0 %v565
      %v583 = vpop.xlane.xlu0 %582
      %584 = vmax.xlane.f32.xlu0 %v566
      %v585 = vpop.xlane.xlu0 %584
      %586 = vmax.xlane.f32.xlu0 %v567
      %v587 = vpop.xlane.xlu0 %586
      %588 = vmax.xlane.f32.xlu0 %v568
      %v589 = vpop.xlane.xlu0 %588
      %590 = vmax.xlane.f32.xlu0 %v569
      %v591 = vpop.xlane.xlu0 %590
      %592 = vmax.xlane.f32.xlu0 %v570
      %v593 = vpop.xlane.xlu0 %592
      %594 = vmax.xlane.f32.xlu0 %v571
      %v595 = vpop.xlane.xlu0 %594
      %596 = vmax.xlane.f32.xlu0 %v572
      %v597 = vpop.xlane.xlu0 %596
      %598 = vmax.xlane.f32.xlu0 %v573
      %v599 = vpop.xlane.xlu0 %598
      %600 = vmax.xlane.f32.xlu0 %v574
      %v601 = vpop.xlane.xlu0 %600
      %602 = vmax.xlane.f32.xlu0 %v575
      %v603 = vpop.xlane.xlu0 %602
      %604 = vmax.xlane.f32.xlu0 %v576
      %v605 = vpop.xlane.xlu0 %604
      %606 = vmax.xlane.f32.xlu0 %v577
      %v607 = vpop.xlane.xlu0 %606
      %608 = vmax.xlane.f32.xlu0 %v578
      %v609 = vpop.xlane.xlu0 %608
      %610 = vmax.xlane.f32.xlu0 %v579
      %v611 = vpop.xlane.xlu0 %610
      %v628 = vlaneseq
      %v629 = vand.u32 %v628, 127
      %v630 = vlaneseq
      %v631 = vshrl.u32 %v630, 7
      %v632 = vsub.s32 %v629, %v631
      %v633 = vrot.slane %v548, %v632
      %v634 = vadd.s32 %v629, 4294967288
      %v635 = vlaneseq
      %v636 = vshrl.u32 %v635, 7
      %v637 = vsub.s32 %v634, %v636
      %v638 = vrot.slane %v549, %v637
      %vm639 = vcmask 130112
      %v640 = vsel %vm639, %v638, %v633
      %v641 = vadd.s32 %v629, 4294967280
      %v642 = vlaneseq
      %v643 = vshrl.u32 %v642, 7
      %v644 = vsub.s32 %v641, %v643
      %v645 = vrot.slane %v550, %v644
      %vm646 = vcmask 195712
      %v647 = vsel %vm646, %v645, %v640
      %v648 = vadd.s32 %v629, 4294967272
      %v649 = vlaneseq
      %v650 = vshrl.u32 %v649, 7
      %v651 = vsub.s32 %v648, %v650
      %v652 = vrot.slane %v551, %v651
      %vm653 = vcmask 261312
      %v654 = vsel %vm653, %v652, %v647
      %v655 = vadd.s32 %v629, 4294967264
      %v656 = vlaneseq
      %v657 = vshrl.u32 %v656, 7
      %v658 = vsub.s32 %v655, %v657
      %v659 = vrot.slane %v552, %v658
      %vm660 = vcmask 326912
      %v661 = vsel %vm660, %v659, %v654
      %v662 = vadd.s32 %v629, 4294967256
      %v663 = vlaneseq
      %v664 = vshrl.u32 %v663, 7
      %v665 = vsub.s32 %v662, %v664
      %v666 = vrot.slane %v553, %v665
      %vm667 = vcmask 392512
      %v668 = vsel %vm667, %v666, %v661
      %v669 = vadd.s32 %v629, 4294967248
      %v670 = vlaneseq
      %v671 = vshrl.u32 %v670, 7
      %v672 = vsub.s32 %v669, %v671
      %v673 = vrot.slane %v554, %v672
      %vm674 = vcmask 458112
      %v675 = vsel %vm674, %v673, %v668
      %v676 = vadd.s32 %v629, 4294967240
      %v677 = vlaneseq
      %v678 = vshrl.u32 %v677, 7
      %v679 = vsub.s32 %v676, %v678
      %v680 = vrot.slane %v555, %v679
      %vm681 = vcmask 523712
      %v682 = vsel %vm681, %v680, %v675
      %v683 = vlaneseq
      %v684 = vshrl.u32 %v683, 7
      %v685 = vsub.s32 %v629, %v684
      %v686 = vrot.slane %v556, %v685
      %v687 = vlaneseq
      %v688 = vshrl.u32 %v687, 7
      %v689 = vsub.s32 %v634, %v688
      %v690 = vrot.slane %v557, %v689
      %v691 = vsel %vm639, %v690, %v686
      %v692 = vlaneseq
      %v693 = vshrl.u32 %v692, 7
      %v694 = vsub.s32 %v641, %v693
      %v695 = vrot.slane %v558, %v694
      %v696 = vsel %vm646, %v695, %v691
      %v697 = vlaneseq
      %v698 = vshrl.u32 %v697, 7
      %v699 = vsub.s32 %v648, %v698
      %v700 = vrot.slane %v559, %v699
      %v701 = vsel %vm653, %v700, %v696
      %v702 = vlaneseq
      %v703 = vshrl.u32 %v702, 7
      %v704 = vsub.s32 %v655, %v703
      %v705 = vrot.slane %v560, %v704
      %v706 = vsel %vm660, %v705, %v701
      %v707 = vlaneseq
      %v708 = vshrl.u32 %v707, 7
      %v709 = vsub.s32 %v662, %v708
      %v710 = vrot.slane %v561, %v709
      %v711 = vsel %vm667, %v710, %v706
      %v712 = vlaneseq
      %v713 = vshrl.u32 %v712, 7
      %v714 = vsub.s32 %v669, %v713
      %v715 = vrot.slane %v562, %v714
      %v716 = vsel %vm674, %v715, %v711
      %v717 = vlaneseq
      %v718 = vshrl.u32 %v717, 7
      %v719 = vsub.s32 %v676, %v718
      %v720 = vrot.slane %v563, %v719
      %v721 = vsel %vm681, %v720, %v716
      %vm722 = vcmask 1041409
      %v723 = vsel %vm722, %v721, %v682
      %v741 = vlaneseq
      %v742 = vshrl.u32 %v741, 7
      %v743 = vsub.s32 %v629, %v742
      %v744 = vrot.slane %v581, %v743
      %v745 = vlaneseq
      %v746 = vshrl.u32 %v745, 7
      %v747 = vsub.s32 %v634, %v746
      %v748 = vrot.slane %v583, %v747
      %v749 = vsel %vm639, %v748, %v744
      %v750 = vlaneseq
      %v751 = vshrl.u32 %v750, 7
      %v752 = vsub.s32 %v641, %v751
      %v753 = vrot.slane %v585, %v752
      %v754 = vsel %vm646, %v753, %v749
      %v755 = vlaneseq
      %v756 = vshrl.u32 %v755, 7
      %v757 = vsub.s32 %v648, %v756
      %v758 = vrot.slane %v587, %v757
      %v759 = vsel %vm653, %v758, %v754
      %v760 = vlaneseq
      %v761 = vshrl.u32 %v760, 7
      %v762 = vsub.s32 %v655, %v761
      %v763 = vrot.slane %v589, %v762
      %v764 = vsel %vm660, %v763, %v759
      %v765 = vlaneseq
      %v766 = vshrl.u32 %v765, 7
      %v767 = vsub.s32 %v662, %v766
      %v768 = vrot.slane %v591, %v767
      %v769 = vsel %vm667, %v768, %v764
      %v770 = vlaneseq
      %v771 = vshrl.u32 %v770, 7
      %v772 = vsub.s32 %v669, %v771
      %v773 = vrot.slane %v593, %v772
      %v774 = vsel %vm674, %v773, %v769
      %v775 = vlaneseq
      %v776 = vshrl.u32 %v775, 7
      %v777 = vsub.s32 %v676, %v776
      %v778 = vrot.slane %v595, %v777
      %v779 = vsel %vm681, %v778, %v774
      %v780 = vlaneseq
      %v781 = vshrl.u32 %v780, 7
      %v782 = vsub.s32 %v629, %v781
      %v783 = vrot.slane %v597, %v782
      %v784 = vlaneseq
      %v785 = vshrl.u32 %v784, 7
      %v786 = vsub.s32 %v634, %v785
      %v787 = vrot.slane %v599, %v786
      %v788 = vsel %vm639, %v787, %v783
      %v789 = vlaneseq
      %v790 = vshrl.u32 %v789, 7
      %v791 = vsub.s32 %v641, %v790
      %v792 = vrot.slane %v601, %v791
      %v793 = vsel %vm646, %v792, %v788
      %v794 = vlaneseq
      %v795 = vshrl.u32 %v794, 7
      %v796 = vsub.s32 %v648, %v795
      %v797 = vrot.slane %v603, %v796
      %v798 = vsel %vm653, %v797, %v793
      %v799 = vlaneseq
      %v800 = vshrl.u32 %v799, 7
      %v801 = vsub.s32 %v655, %v800
      %v802 = vrot.slane %v605, %v801
      %v803 = vsel %vm660, %v802, %v798
      %v804 = vlaneseq
      %v805 = vshrl.u32 %v804, 7
      %v806 = vsub.s32 %v662, %v805
      %v807 = vrot.slane %v607, %v806
      %v808 = vsel %vm667, %v807, %v803
      %v809 = vlaneseq
      %v810 = vshrl.u32 %v809, 7
      %v811 = vsub.s32 %v669, %v810
      %v812 = vrot.slane %v609, %v811
      %v813 = vsel %vm674, %v812, %v808
      %v814 = vlaneseq
      %v815 = vshrl.u32 %v814, 7
      %v816 = vsub.s32 %v676, %v815
      %v817 = vrot.slane %v611, %v816
      %v818 = vsel %vm681, %v817, %v813
      %vm819 = vcmask 1043459
      %v820 = vsel %vm819, %v818, %v779
      %vm822 = vcmask 1041408
      %v823 = vsel %vm822, %v723, %v820
      %v824 = vld [vmem:[%s1] sm:$0xff]
      %v825 = vld [vmem:[%s1 + $0x8] sm:$0xff]
      %v826 = vld [vmem:[%s1 + $0x10] sm:$0xff]
      %v827 = vld [vmem:[%s1 + $0x18] sm:$0xff]
      %v828 = vld [vmem:[%s1 + $0x20] sm:$0xff]
      %v829 = vld [vmem:[%s1 + $0x28] sm:$0xff]
      %v830 = vld [vmem:[%s1 + $0x30] sm:$0xff]
      %v831 = vld [vmem:[%s1 + $0x38] sm:$0xff]
      %v833 = vsel %vm432, %v823, 0
      %835 = vmatprep.subr.mxu0 0.0
      %836 = vmatpush1.msra.mxu0 %v824
      %837 = vmatprep.subr.mxu0 0.0
      %838 = vmatpush1.msra.mxu0 %v825
      %839 = vmatprep.subr.mxu0 0.0
      %840 = vmatpush1.msra.mxu0 %v826
      %841 = vmatprep.subr.mxu0 0.0
      %842 = vmatpush1.msra.mxu0 %v827
      %843 = vmatprep.subr.mxu0 0.0
      %844 = vmatpush1.msra.mxu0 %v828
      %845 = vmatprep.subr.mxu0 0.0
      %846 = vmatpush1.msra.mxu0 %v829
      %847 = vmatprep.subr.mxu0 0.0
      %848 = vmatpush1.msra.mxu0 %v830
      %849 = vmatprep.subr.mxu0 0.0
      %850 = vmatpush1.msra.mxu0 %v831
      %851 = vmatprep.subr.mxu0 0.0
      %852 = vmatpush1.msra.mxu0 0.0
      %853 = vmatprep.subr.mxu0 0.0
      %854 = vmatpush1.msra.mxu0 0.0
      %855 = vmatprep.subr.mxu0 0.0
      %856 = vmatpush1.msra.mxu0 0.0
      %857 = vmatprep.subr.mxu0 0.0
      %858 = vmatpush1.msra.mxu0 0.0
      %859 = vmatprep.subr.mxu0 0.0
      %860 = vmatpush1.msra.mxu0 0.0
      %861 = vmatprep.subr.mxu0 0.0
      %862 = vmatpush1.msra.mxu0 0.0
      %863 = vmatprep.subr.mxu0 0.0
      %864 = vmatpush1.msra.mxu0 0.0
      %865 = vmatprep.subr.mxu0 0.0
      %866 = vmatpush1.msra.mxu0 0.0
      %867 = vmatprep.subr.mxu0 0.0
      %868 = vmatpush1.msra.mxu0 0.0
      %869 = vmatprep.subr.mxu0 0.0
      %870 = vmatpush1.msra.mxu0 0.0
      %871 = vmatprep.subr.mxu0 0.0
      %872 = vmatpush1.msra.mxu0 0.0
      %873 = vmatprep.subr.mxu0 0.0
      %874 = vmatpush1.msra.mxu0 0.0
      %875 = vmatprep.subr.mxu0 0.0
      %876 = vmatpush1.msra.mxu0 0.0
      %877 = vmatprep.subr.mxu0 0.0
      %878 = vmatpush1.msra.mxu0 0.0
      %879 = vmatprep.subr.mxu0 0.0
      %880 = vmatpush1.msra.mxu0 0.0
      %881 = vmatprep.subr.mxu0 0.0
      %882 = vmatpush1.msra.mxu0 0.0
      %883 = vmatprep.subr.mxu0 0.0
      %884 = vmatpush1.msra.mxu0 0.0
      %885 = vmatprep.subr.mxu0 0.0
      %886 = vmatpush1.msra.mxu0 0.0
      %887 = vmatprep.subr.mxu0 0.0
      %888 = vmatpush1.msra.mxu0 0.0
      %889 = vmatprep.subr.mxu0 0.0
      %890 = vmatpush1.msra.mxu0 0.0
      %891 = vmatprep.subr.mxu0 0.0
      %892 = vmatpush1.msra.mxu0 0.0
      %893 = vmatprep.subr.mxu0 0.0
      %894 = vmatpush1.msra.mxu0 0.0
      %895 = vmatprep.subr.mxu0 0.0
      %896 = vmatpush1.msra.mxu0 0.0
      %897 = vmatprep.subr.mxu0 0.0
      %898 = vmatpush1.msra.mxu0 0.0
      %899 = vmatprep.mubr.f32.mxu0 0.0
      %900 = vmatmul.mubr.f32.gmra.mrb[0].mxu0 %v833
      %v901 = vpop.f32.mrb[0].mxu0
      %v902 = vadd.f32 0.0, %v901
      %v903 = vpop.f32.mrb[0].mxu0
      %904 = vdwg.mxu0
      %v905 = vmax.f32 %v902, 0.0
      %v907 = vrot.slane %v905, 2
      %v909 = vadd.f32 %v905, %v907
      %v910 = vld [vmem:[%s2] sm:$0xf]
      %vm911 = vcmask 31744
      %v913 = vsel %vm911, %v909, 0
      %vm915 = vcmask 1043456
      %v917 = vsel %vm915, %v910, 0
      %919 = vmatprep.subr.mxu0 0.0
      %920 = vmatpush1.msra.mxu0 %v917
      %921 = vmatprep.subr.mxu0 0.0
      %922 = vmatpush1.msra.mxu0 0.0
      %923 = vmatprep.subr.mxu0 0.0
      %924 = vmatpush1.msra.mxu0 0.0
      %925 = vmatprep.subr.mxu0 0.0
      %926 = vmatpush1.msra.mxu0 0.0
      %927 = vmatprep.subr.mxu0 0.0
      %928 = vmatpush1.msra.mxu0 0.0
      %929 = vmatprep.subr.mxu0 0.0
      %930 = vmatpush1.msra.mxu0 0.0
      %931 = vmatprep.subr.mxu0 0.0
      %932 = vmatpush1.msra.mxu0 0.0
      %933 = vmatprep.subr.mxu0 0.0
      %934 = vmatpush1.msra.mxu0 0.0
      %935 = vmatprep.subr.mxu0 0.0
      %936 = vmatpush1.msra.mxu0 0.0
      %937 = vmatprep.subr.mxu0 0.0
      %938 = vmatpush1.msra.mxu0 0.0
      %939 = vmatprep.subr.mxu0 0.0
      %940 = vmatpush1.msra.mxu0 0.0
      %941 = vmatprep.subr.mxu0 0.0
      %942 = vmatpush1.msra.mxu0 0.0
      %943 = vmatprep.subr.mxu0 0.0
      %944 = vmatpush1.msra.mxu0 0.0
      %945 = vmatprep.subr.mxu0 0.0
      %946 = vmatpush1.msra.mxu0 0.0
      %947 = vmatprep.subr.mxu0 0.0
      %948 = vmatpush1.msra.mxu0 0.0
      %949 = vmatprep.subr.mxu0 0.0
      %950 = vmatpush1.msra.mxu0 0.0
      %951 = vmatprep.subr.mxu0 0.0
      %952 = vmatpush1.msra.mxu0 0.0
      %953 = vmatprep.subr.mxu0 0.0
      %954 = vmatpush1.msra.mxu0 0.0
      %955 = vmatprep.subr.mxu0 0.0
      %956 = vmatpush1.msra.mxu0 0.0
      %957 = vmatprep.subr.mxu0 0.0
      %958 = vmatpush1.msra.mxu0 0.0
      %959 = vmatprep.subr.mxu0 0.0
      %960 = vmatpush1.msra.mxu0 0.0
      %961 = vmatprep.subr.mxu0 0.0
      %962 = vmatpush1.msra.mxu0 0.0
      %963 = vmatprep.subr.mxu0 0.0
      %964 = vmatpush1.msra.mxu0 0.0
      %965 = vmatprep.subr.mxu0 0.0
      %966 = vmatpush1.msra.mxu0 0.0
      %967 = vmatprep.subr.mxu0 0.0
      %968 = vmatpush1.msra.mxu0 0.0
      %969 = vmatprep.subr.mxu0 0.0
      %970 = vmatpush1.msra.mxu0 0.0
      %971 = vmatprep.subr.mxu0 0.0
      %972 = vmatpush1.msra.mxu0 0.0
      %973 = vmatprep.subr.mxu0 0.0
      %974 = vmatpush1.msra.mxu0 0.0
      %975 = vmatprep.subr.mxu0 0.0
      %976 = vmatpush1.msra.mxu0 0.0
      %977 = vmatprep.subr.mxu0 0.0
      %978 = vmatpush1.msra.mxu0 0.0
      %979 = vmatprep.subr.mxu0 0.0
      %980 = vmatpush1.msra.mxu0 0.0
      %981 = vmatprep.subr.mxu0 0.0
      %982 = vmatpush1.msra.mxu0 0.0
      %983 = vmatprep.mubr.f32.mxu0 0.0
      %984 = vmatmul.mubr.f32.gmra.mrb[0].mxu0 %v913
      %v985 = vpop.f32.mrb[0].mxu0
      %v986 = vadd.f32 0.0, %v985
      %v987 = vpop.f32.mrb[0].mxu0
      %988 = vdwg.mxu0
      %v989 = vxor.u32 %v986, 2147483648
      %v990 = vmul.f32 %v989, 1.442695
      %v991 = vpow.pop %v990
      %v992 = vadd.f32 %v991, 1.0
      %v993 = vrcp.pop %v992
      %v994 = vmul.f32 1.0, %v993
      %v995 = vlaneseq
      %v996 = vshrl.u32 %v995, 7
      %v997 = vsub.s32 0, %v996
      %v998 = vrot.slane %v994, %v997
      %1000 = vbcast.lane.b32.xlu0 %v998, 256
      %v1001 = vpop.permute.xlu0 %1000
      %s1003 = sor.u32 256, 8
      %1004 = vbcast.lane.b32.xlu0 %v998, %s1003
      %v1005 = vpop.permute.xlu0 %1004
      %s1007 = sor.u32 256, 16
      %1008 = vbcast.lane.b32.xlu0 %v998, %s1007
      %v1009 = vpop.permute.xlu0 %1008
      %s1011 = sor.u32 256, 24
      %1012 = vbcast.lane.b32.xlu0 %v998, %s1011
      %v1013 = vpop.permute.xlu0 %1012
      %s1015 = sor.u32 256, 32
      %1016 = vbcast.lane.b32.xlu0 %v998, %s1015
      %v1017 = vpop.permute.xlu0 %1016
      %s1019 = sor.u32 256, 40
      %1020 = vbcast.lane.b32.xlu0 %v998, %s1019
      %v1021 = vpop.permute.xlu0 %1020
      %s1023 = sor.u32 256, 48
      %1024 = vbcast.lane.b32.xlu0 %v998, %s1023
      %v1025 = vpop.permute.xlu0 %1024
      %s1027 = sor.u32 256, 56
      %1028 = vbcast.lane.b32.xlu0 %v998, %s1027
      %v1029 = vpop.permute.xlu0 %1028
      %v1030 = vlaneseq
      %v1031 = vshrl.u32 %v1030, 7
      %v1032 = vsub.s32 1, %v1031
      %v1033 = vrot.slane %v994, %v1032
      %1035 = vbcast.lane.b32.xlu0 %v1033, 256
      %v1036 = vpop.permute.xlu0 %1035
      %s1038 = sor.u32 256, 8
      %1039 = vbcast.lane.b32.xlu0 %v1033, %s1038
      %v1040 = vpop.permute.xlu0 %1039
      %s1042 = sor.u32 256, 16
      %1043 = vbcast.lane.b32.xlu0 %v1033, %s1042
      %v1044 = vpop.permute.xlu0 %1043
      %s1046 = sor.u32 256, 24
      %1047 = vbcast.lane.b32.xlu0 %v1033, %s1046
      %v1048 = vpop.permute.xlu0 %1047
      %s1050 = sor.u32 256, 32
      %1051 = vbcast.lane.b32.xlu0 %v1033, %s1050
      %v1052 = vpop.permute.xlu0 %1051
      %s1054 = sor.u32 256, 40
      %1055 = vbcast.lane.b32.xlu0 %v1033, %s1054
      %v1056 = vpop.permute.xlu0 %1055
      %s1058 = sor.u32 256, 48
      %1059 = vbcast.lane.b32.xlu0 %v1033, %s1058
      %v1060 = vpop.permute.xlu0 %1059
      %s1062 = sor.u32 256, 56
      %1063 = vbcast.lane.b32.xlu0 %v1033, %s1062
      %v1064 = vpop.permute.xlu0 %1063
      %vm1065 = vcmask 7168
      %1066 = vst.msk [vmem:[%s3] sm:$0xff] %vm1065, %v1001
      %1067 = vst.msk [vmem:[%s3 + $0x8] sm:$0xff] %vm1065, %v1005
      %1068 = vst.msk [vmem:[%s3 + $0x10] sm:$0xff] %vm1065, %v1009
      %1069 = vst.msk [vmem:[%s3 + $0x18] sm:$0xff] %vm1065, %v1013
      %1070 = vst.msk [vmem:[%s3 + $0x20] sm:$0xff] %vm1065, %v1017
      %1071 = vst.msk [vmem:[%s3 + $0x28] sm:$0xff] %vm1065, %v1021
      %1072 = vst.msk [vmem:[%s3 + $0x30] sm:$0xff] %vm1065, %v1025
      %1073 = vst.msk [vmem:[%s3 + $0x38] sm:$0xff] %vm1065, %v1029
      %1074 = vst.msk [vmem:[%s3 + $0x40] sm:$0xff] %vm1065, %v1036
      %1075 = vst.msk [vmem:[%s3 + $0x48] sm:$0xff] %vm1065, %v1040
      %1076 = vst.msk [vmem:[%s3 + $0x50] sm:$0xff] %vm1065, %v1044
      %1077 = vst.msk [vmem:[%s3 + $0x58] sm:$0xff] %vm1065, %v1048
      %1078 = vst.msk [vmem:[%s3 + $0x60] sm:$0xff] %vm1065, %v1052
      %1079 = vst.msk [vmem:[%s3 + $0x68] sm:$0xff] %vm1065, %v1056
      %1080 = vst.msk [vmem:[%s3 + $0x70] sm:$0xff] %vm1065, %v1060
      %1081 = vst.msk [vmem:[%s3 + $0x78] sm:$0xff] %vm1065, %v1064
    $region25: #{tpu_custom_call.1} parent=1 // pred_fallthru
      _
    // Predicated region
    $region26: #{tpu_custom_call.1} parent=1 // pred_check
      _
    $region27: #{tpu_custom_call.1} parent=1 // pred_check_branch
      %1083 = sbr.rel (0) target = $region29
    $region28: #{tpu_custom_call.1} parent=1 // pred_region
      _
    $region29: #{tpu_custom_call.1} parent=1 // pred_fallthru
      _
    // Predicated region
    $region30: #{tpu_custom_call.1} parent=1 // pred_check
      _
    $region31: #{tpu_custom_call.1} parent=1 // pred_check_branch
      %1085 = sbr.rel (0) target = $region33
    $region32: #{tpu_custom_call.1} parent=1 // pred_region
      _
    $region33: #{tpu_custom_call.1} parent=1 // pred_fallthru
      _
    %1086 = vsyncpa [#allocation5], 1

</llo_original>
